<compile_context>
chip_gen: v6e
topology: v6e:2x2x1
jax: 0.10.0
libtpu: 0.0.40
codegen_flags: <defaults>
</compile_context>

<pallas_src>
import jax
import jax.numpy as jnp
from jax.experimental import pallas as pl

NUM_DEVICES = 2   # simulated len(self.model.device_ids) of the DataParallel wrapper
NUM_CLASSES = 10  # CIFAR-10 classifier head
HIDDEN = 32

LANE = 128        # class dim padded to one full lane tile
SUBLANE = 8
NEG_BIAS = -1e30  # bias on padded class lanes -> softmax prob underflows to 0


def model_mean_ep_kernel(x_ref, w1_ref, b1_ref, w2_ref, b2_ref, sel_ref, o_ref):
    # x_ref  : (B, F)          bf16
    # w1_ref : (F, HIDDEN)     bf16      b1_ref: (1, HIDDEN) f32
    # w2_ref : (HIDDEN, LANE)  bf16      b2_ref: (1, LANE)   f32 (NEG_BIAS on pad lanes)
    # sel_ref: (SUBLANE, B)    f32  -- row d holds 1/chunk over chunk d's rows, else 0
    # o_ref  : (SUBLANE, LANE) f32  -- row d = per-chunk softmax mean of chunk d

    # model(x): Linear -> ReLU -> Linear   (bf16 MXU matmuls, f32 accumulation)
    h = jnp.dot(x_ref[...], w1_ref[...],
                preferred_element_type=jnp.float32) + b1_ref[...]
    h = jnp.maximum(h, 0.0)
    logits = jnp.dot(h.astype(jnp.bfloat16), w2_ref[...],
                     preferred_element_type=jnp.float32) + b2_ref[...]

    # Softmax(-1), numerically stable; padded class lanes carry -1e30 so their
    # probability underflows to exactly 0.  Reciprocal goes to the EUP slot.
    m = jnp.max(logits, axis=-1, keepdims=True)
    e = jnp.exp(logits - m)
    p = e * pl.reciprocal(jnp.sum(e, axis=-1, keepdims=True), approx=True)

    # Both per-chunk mean(0)'s in one selector matmul on the MXU -> a single
    # (SUBLANE, LANE) lane-dense tile written with one unmasked store.
    o_ref[...] = jnp.dot(sel_ref[...], p, preferred_element_type=jnp.float32)


def prepare_params(w1, b1, w2, b2):
    """Pad NUM_CLASSES up to a 128-lane tile and cast matmul operands to bf16.
    Done once, outside the hot path.  HIDDEN stays unpadded (saves W1 DMA)."""
    F, H = w1.shape
    _, C = w2.shape
    w1p = w1.astype(jnp.bfloat16)                                    # (F, H)
    b1p = b1.reshape(1, H).astype(jnp.float32)                       # (1, H)
    w2p = (jnp.zeros((H, LANE), jnp.float32).at[:, :C].set(w2)
           .astype(jnp.bfloat16))                                    # (H, LANE)
    b2p = jnp.full((1, LANE), NEG_BIAS, jnp.float32).at[:, :C].set(
        b2.reshape(1, C))                                            # (1, LANE)
    return w1p, b1p, w2p, b2p


def model_mean_ep(x, w1p, b1p, w2p, b2p, num_devices=NUM_DEVICES,
                  num_classes=NUM_CLASSES):
    """x: (B, C, H, W) NCHW float32.  Returns (num_devices * num_classes,) like torch.cat."""
    B = x.shape[0]
    assert B % num_devices == 0, "batch must split evenly across simulated devices"
    assert num_devices <= SUBLANE
    chunk = B // num_devices

    # glue: NCHW flatten (matches torch flatten order); bf16 halves HBM traffic
    xf = x.reshape(B, -1).astype(jnp.bfloat16)
    F = xf.shape[1]
    hidden = w1p.shape[1]

    # selector: row d averages chunk d; rows >= num_devices stay zero
    sel = ((jnp.arange(SUBLANE)[:, None] == (jnp.arange(B)[None, :] // chunk))
           .astype(jnp.float32) / chunk)

    cost = pl.CostEstimate(
        flops=2 * B * F * hidden + 2 * B * hidden * LANE + 2 * SUBLANE * B * LANE,
        transcendentals=B * LANE + B,
        bytes_accessed=(xf.size * 2 + w1p.size * 2 + w2p.size * 2
                        + (b1p.size + b2p.size + sel.size) * 4
                        + SUBLANE * LANE * 4),
    )

    out = pl.pallas_call(
        model_mean_ep_kernel,
        out_shape=jax.ShapeDtypeStruct((SUBLANE, LANE), jnp.float32),
        cost_estimate=cost,
    )(xf, w1p, b1p, w2p, b2p, sel)

    # torch.cat of the per-chunk means along dim 0 -> 1-D vector
    # (row d of the padded tile holds chunk d's mean; strip class padding).
    return out[:num_devices, :num_classes].reshape(-1)


def init_params(key, in_features, hidden, num_classes):
    """Deterministic nn.Linear-style init (uniform +- 1/sqrt(fan_in))."""
    k1, k2, k3, k4 = jax.random.split(key, 4)
    lim1 = 1.0 / jnp.sqrt(jnp.float32(in_features))
    lim2 = 1.0 / jnp.sqrt(jnp.float32(hidden))
    w1 = jax.random.uniform(k1, (in_features, hidden), jnp.float32, -lim1, lim1)
    b1 = jax.random.uniform(k2, (1, hidden), jnp.float32, -lim1, lim1)
    w2 = jax.random.uniform(k3, (hidden, num_classes), jnp.float32, -lim2, lim2)
    b2 = jax.random.uniform(k4, (1, num_classes), jnp.float32, -lim2, lim2)
    return w1, b1, w2, b2


if __name__ == "__main__":
    key = jax.random.PRNGKey(0)
    kx, kp = jax.random.split(key)

    # Small CIFAR-like input: batch=8 (2 simulated devices x 4-row chunks),
    # channels=4, spatial=16x16 (NCHW).
    B, C, H, W = 8, 4, 16, 16
    x = jax.random.normal(kx, (B, C, H, W), dtype=jnp.float32)

    w1, b1, w2, b2 = init_params(kp, C * H * W, HIDDEN, NUM_CLASSES)
    w1p, b1p, w2p, b2p = prepare_params(w1, b1, w2, b2)

    out = jax.block_until_ready(model_mean_ep(x, w1p, b1p, w2p, b2p))

    # Pure-JAX f32 reference of the same semantics (kernel runs bf16 matmuls,
    # so tolerance is loosened accordingly).
    xf = x.reshape(B, -1)
    logits = jnp.maximum(xf @ w1 + b1, 0.0) @ w2 + b2
    p = jax.nn.softmax(logits, axis=-1)
    ref = jnp.concatenate(
        [c.mean(0) for c in jnp.split(p, NUM_DEVICES, axis=0)], axis=0)

    assert out.shape == (NUM_DEVICES * NUM_CLASSES,)
    assert jnp.allclose(out, ref, atol=2e-2, rtol=2e-2)

    print("KERNEL_OK")
</pallas_src>

<mosaic_0001>
module attributes {stable_mosaic.version = 11 : i64} {
  func.func @model_mean_ep_kernel(%arg0: memref<8x1024xbf16, #tpu.memory_space<vmem>>, %arg1: memref<1024x32xbf16, #tpu.memory_space<vmem>>, %arg2: memref<1x32xf32, #tpu.memory_space<vmem>>, %arg3: memref<32x128xbf16, #tpu.memory_space<vmem>>, %arg4: memref<1x128xf32, #tpu.memory_space<vmem>>, %arg5: memref<8x8xf32, #tpu.memory_space<vmem>>, %arg6: memref<8x128xf32, #tpu.memory_space<vmem>>) attributes {dimension_semantics = [], scalar_prefetch = 0 : i64, scratch_operands = 0 : i64, tpu.core_type = #tpu.core_type<tc>} {
    %c0 = arith.constant 0 : index
    %c0_0 = arith.constant 0 : index
    %0 = vector.load %arg0[%c0, %c0_0] : memref<8x1024xbf16, #tpu.memory_space<vmem>>, vector<8x1024xbf16>
    %c0_1 = arith.constant 0 : index
    %c0_2 = arith.constant 0 : index
    %1 = vector.load %arg1[%c0_1, %c0_2] : memref<1024x32xbf16, #tpu.memory_space<vmem>>, vector<1024x32xbf16>
    %cst = arith.constant dense<0.000000e+00> : vector<8x32xf32>
    %2 = tpu.matmul %0, %1, %cst {dimension_numbers = #tpu.dot_dimension_numbers<[1], [0], [0], [1], [0, 0, 1, 1], [], []>} : vector<8x1024xbf16>, vector<1024x32xbf16>, vector<8x32xf32> -> vector<8x32xf32>
    %c0_3 = arith.constant 0 : index
    %c0_4 = arith.constant 0 : index
    %3 = vector.load %arg2[%c0_3, %c0_4] : memref<1x32xf32, #tpu.memory_space<vmem>>, vector<1x32xf32>
    %4 = vector.broadcast %3 : vector<1x32xf32> to vector<8x32xf32>
    %5 = arith.addf %2, %4 : vector<8x32xf32>
    %cst_5 = arith.constant 0.000000e+00 : f32
    %6 = vector.broadcast %cst_5 : f32 to vector<8x32xf32>
    %7 = arith.maximumf %5, %6 : vector<8x32xf32>
    %8 = arith.truncf %7 : vector<8x32xf32> to vector<8x32xbf16>
    %c0_6 = arith.constant 0 : index
    %c0_7 = arith.constant 0 : index
    %9 = vector.load %arg3[%c0_6, %c0_7] : memref<32x128xbf16, #tpu.memory_space<vmem>>, vector<32x128xbf16>
    %cst_8 = arith.constant dense<0.000000e+00> : vector<8x128xf32>
    %10 = tpu.matmul %8, %9, %cst_8 {dimension_numbers = #tpu.dot_dimension_numbers<[1], [0], [0], [1], [0, 0, 1, 1], [], []>} : vector<8x32xbf16>, vector<32x128xbf16>, vector<8x128xf32> -> vector<8x128xf32>
    %c0_9 = arith.constant 0 : index
    %c0_10 = arith.constant 0 : index
    %11 = vector.load %arg4[%c0_9, %c0_10] : memref<1x128xf32, #tpu.memory_space<vmem>>, vector<1x128xf32>
    %12 = vector.broadcast %11 : vector<1x128xf32> to vector<8x128xf32>
    %13 = arith.addf %10, %12 : vector<8x128xf32>
    %cst_11 = arith.constant dense<0xFF800000> : vector<8xf32>
    %14 = vector.multi_reduction <maximumf>, %13, %cst_11 [1] : vector<8x128xf32> to vector<8xf32>
    %15 = vector.shape_cast %14 : vector<8xf32> to vector<8x1xf32>
    %16 = vector.broadcast %15 : vector<8x1xf32> to vector<8x128xf32>
    %17 = arith.subf %13, %16 : vector<8x128xf32>
    %18 = math.exp %17 : vector<8x128xf32>
    %cst_12 = arith.constant dense<0.000000e+00> : vector<8xf32>
    %19 = vector.multi_reduction <add>, %18, %cst_12 [1] : vector<8x128xf32> to vector<8xf32>
    %20 = vector.shape_cast %19 : vector<8xf32> to vector<8x1xf32>
    %21 = tpu.reciprocal %20 {approx = true} : vector<8x1xf32> -> vector<8x1xf32>
    %22 = vector.broadcast %21 : vector<8x1xf32> to vector<8x128xf32>
    %23 = arith.mulf %18, %22 : vector<8x128xf32>
    %c0_13 = arith.constant 0 : index
    %c0_14 = arith.constant 0 : index
    %24 = vector.load %arg5[%c0_13, %c0_14] : memref<8x8xf32, #tpu.memory_space<vmem>>, vector<8x8xf32>
    %cst_15 = arith.constant dense<0.000000e+00> : vector<8x128xf32>
    %25 = tpu.matmul %24, %23, %cst_15 {dimension_numbers = #tpu.dot_dimension_numbers<[1], [0], [0], [1], [0, 0, 1, 1], [], []>} : vector<8x8xf32>, vector<8x128xf32>, vector<8x128xf32> -> vector<8x128xf32>
    %c0_16 = arith.constant 0 : index
    %c0_17 = arith.constant 0 : index
    %26 = vector.load %arg6[%c0_16, %c0_17] : memref<8x128xf32, #tpu.memory_space<vmem>>, vector<8x128xf32>
    tpu.vector_store %arg6[%c0_16, %c0_17], %25 {strides = array<i32>} : memref<8x128xf32, #tpu.memory_space<vmem>>, vector<8x128xf32>,
    return
  }
}

</mosaic_0001>

<llo_original>
// kernel: tpu_custom_call.1
$region0: #{tpu_custom_call.1}
  #allocation0 [shape = 'u32[]', space=smem, size = 0x4, offset = 0x4, fixed_abs, tag = 'smem constant byte address 0x4 - core index']
  #allocation1 [shape = 'u32[144,128]{1,0:T(1,128)}', space=vmem, size = 0x12000, scoped, tag = 'internal scratch']
  %s0 = inlined_call_operand.vmem [shape: bf16[8,1024], index: 0, kind: input, shape index: {}]
  %s1 = inlined_call_operand.vmem [shape: bf16[1024,32], index: 1, kind: input, shape index: {}]
  %s2 = inlined_call_operand.vmem [shape: f32[1,32], index: 2, kind: input, shape index: {}]
  %s3 = inlined_call_operand.vmem [shape: bf16[32,128], index: 3, kind: input, shape index: {}]
  %s4 = inlined_call_operand.vmem [shape: f32[1,128], index: 4, kind: input, shape index: {}]
  %s5 = inlined_call_operand.vmem [shape: f32[8,8], index: 5, kind: input, shape index: {}]
  %s6 = inlined_call_operand.hbm [shape: f32[8,128], index: 6, kind: output, shape index: {}]
  %s7 = sld [smem:[#allocation0]]
  $region34: #{tpu_custom_call.1} parent=0
    _
  %s9 = ssub.s32 1, %s7
  %s10 = scalar_select 0, %s9, %s7
  $region1: #{tpu_custom_call.1} parent=0
    #allocation2 [shape = 'u8[4096]{0}', space=vmem, size = 0x1000, scoped, tag = 'output window, operand 0, single buffered']
    #allocation3 [shape = 's32[1]{0}', space=sflag, size = 0x4, scoped, tag = 'scoped memory for tpu_custom_call.1']
    %11 = vsyncpa [#allocation3], 0
    // Predicated region
    $region2: #{tpu_custom_call.1} parent=1 // pred_check
      _
    $region3: #{tpu_custom_call.1} parent=1 // pred_check_branch
      %13 = sbr.rel (0) target = $region5
    $region4: #{tpu_custom_call.1} parent=1 // pred_region
      _
    $region5: #{tpu_custom_call.1} parent=1 // pred_fallthru
      _
    // Predicated region
    $region6: #{tpu_custom_call.1} parent=1 // pred_check
      _
    $region7: #{tpu_custom_call.1} parent=1 // pred_check_branch
      %15 = sbr.rel (0) target = $region9
    $region8: #{tpu_custom_call.1} parent=1 // pred_region
      _
    $region9: #{tpu_custom_call.1} parent=1 // pred_fallthru
      _
    // Predicated region
    $region10: #{tpu_custom_call.1} parent=1 // pred_check
      _
    $region11: #{tpu_custom_call.1} parent=1 // pred_check_branch
      %17 = sbr.rel (0) target = $region13
    $region12: #{tpu_custom_call.1} parent=1 // pred_region
      _
    $region13: #{tpu_custom_call.1} parent=1 // pred_fallthru
      _
    // Predicated region
    $region14: #{tpu_custom_call.1} parent=1 // pred_check
      _
    $region15: #{tpu_custom_call.1} parent=1 // pred_check_branch
      %19 = sbr.rel (0) target = $region17
    $region16: #{tpu_custom_call.1} parent=1 // pred_region
      _
    $region17: #{tpu_custom_call.1} parent=1 // pred_fallthru
      _
    // Predicated region
    $region18: #{tpu_custom_call.1} parent=1 // pred_check
      _
    $region19: #{tpu_custom_call.1} parent=1 // pred_check_branch
      %21 = sbr.rel (0) target = $region21
    $region20: #{tpu_custom_call.1} parent=1 // pred_region
      _
    $region21: #{tpu_custom_call.1} parent=1 // pred_fallthru
      _
    // Predicated region
    $region22: #{tpu_custom_call.1} parent=1 // pred_check
      _
    $region23: #{tpu_custom_call.1} parent=1 // pred_check_branch
      %23 = sbr.rel (0) target = $region25
    $region24: #{tpu_custom_call.1} parent=1 // pred_region
      _
    $region25: #{tpu_custom_call.1} parent=1 // pred_fallthru
      _
    %v25 = vld [vmem:[%s0] sm:$0xff]
    %v26 = vld [vmem:[%s0 + $0x8] sm:$0xff]
    %v27 = vld [vmem:[%s0 + $0x10] sm:$0xff]
    %v28 = vld [vmem:[%s0 + $0x18] sm:$0xff]
    %v29 = vld [vmem:[%s1] sm:$0xf]
    %v30 = vld [vmem:[%s1 + $0x4] sm:$0xf]
    %v31 = vld [vmem:[%s1 + $0x8] sm:$0xf]
    %v32 = vld [vmem:[%s1 + $0xc] sm:$0xf]
    %v33 = vld [vmem:[%s1 + $0x10] sm:$0xf]
    %v34 = vld [vmem:[%s1 + $0x14] sm:$0xf]
    %v35 = vld [vmem:[%s1 + $0x18] sm:$0xf]
    %v36 = vld [vmem:[%s1 + $0x1c] sm:$0xf]
    %v37 = vld [vmem:[%s1 + $0x20] sm:$0xf]
    %v38 = vld [vmem:[%s1 + $0x24] sm:$0xf]
    %v39 = vld [vmem:[%s1 + $0x28] sm:$0xf]
    %v40 = vld [vmem:[%s1 + $0x2c] sm:$0xf]
    %v41 = vld [vmem:[%s1 + $0x30] sm:$0xf]
    %v42 = vld [vmem:[%s1 + $0x34] sm:$0xf]
    %v43 = vld [vmem:[%s1 + $0x38] sm:$0xf]
    %v44 = vld [vmem:[%s1 + $0x3c] sm:$0xf]
    %v45 = vld [vmem:[%s1 + $0x40] sm:$0xf]
    %v46 = vld [vmem:[%s1 + $0x44] sm:$0xf]
    %v47 = vld [vmem:[%s1 + $0x48] sm:$0xf]
    %v48 = vld [vmem:[%s1 + $0x4c] sm:$0xf]
    %v49 = vld [vmem:[%s1 + $0x50] sm:$0xf]
    %v50 = vld [vmem:[%s1 + $0x54] sm:$0xf]
    %v51 = vld [vmem:[%s1 + $0x58] sm:$0xf]
    %v52 = vld [vmem:[%s1 + $0x5c] sm:$0xf]
    %v53 = vld [vmem:[%s1 + $0x60] sm:$0xf]
    %v54 = vld [vmem:[%s1 + $0x64] sm:$0xf]
    %v55 = vld [vmem:[%s1 + $0x68] sm:$0xf]
    %v56 = vld [vmem:[%s1 + $0x6c] sm:$0xf]
    %v57 = vld [vmem:[%s1 + $0x70] sm:$0xf]
    %v58 = vld [vmem:[%s1 + $0x74] sm:$0xf]
    %v59 = vld [vmem:[%s1 + $0x78] sm:$0xf]
    %v60 = vld [vmem:[%s1 + $0x7c] sm:$0xf]
    %v61 = vld [vmem:[%s1 + $0x80] sm:$0xf]
    %v62 = vld [vmem:[%s1 + $0x84] sm:$0xf]
    %v63 = vld [vmem:[%s1 + $0x88] sm:$0xf]
    %v64 = vld [vmem:[%s1 + $0x8c] sm:$0xf]
    %v65 = vld [vmem:[%s1 + $0x90] sm:$0xf]
    %v66 = vld [vmem:[%s1 + $0x94] sm:$0xf]
    %v67 = vld [vmem:[%s1 + $0x98] sm:$0xf]
    %v68 = vld [vmem:[%s1 + $0x9c] sm:$0xf]
    %v69 = vld [vmem:[%s1 + $0xa0] sm:$0xf]
    %v70 = vld [vmem:[%s1 + $0xa4] sm:$0xf]
    %v71 = vld [vmem:[%s1 + $0xa8] sm:$0xf]
    %v72 = vld [vmem:[%s1 + $0xac] sm:$0xf]
    %v73 = vld [vmem:[%s1 + $0xb0] sm:$0xf]
    %v74 = vld [vmem:[%s1 + $0xb4] sm:$0xf]
    %v75 = vld [vmem:[%s1 + $0xb8] sm:$0xf]
    %v76 = vld [vmem:[%s1 + $0xbc] sm:$0xf]
    %v77 = vld [vmem:[%s1 + $0xc0] sm:$0xf]
    %v78 = vld [vmem:[%s1 + $0xc4] sm:$0xf]
    %v79 = vld [vmem:[%s1 + $0xc8] sm:$0xf]
    %v80 = vld [vmem:[%s1 + $0xcc] sm:$0xf]
    %v81 = vld [vmem:[%s1 + $0xd0] sm:$0xf]
    %v82 = vld [vmem:[%s1 + $0xd4] sm:$0xf]
    %v83 = vld [vmem:[%s1 + $0xd8] sm:$0xf]
    %v84 = vld [vmem:[%s1 + $0xdc] sm:$0xf]
    %v85 = vld [vmem:[%s1 + $0xe0] sm:$0xf]
    %v86 = vld [vmem:[%s1 + $0xe4] sm:$0xf]
    %v87 = vld [vmem:[%s1 + $0xe8] sm:$0xf]
    %v88 = vld [vmem:[%s1 + $0xec] sm:$0xf]
    %v89 = vld [vmem:[%s1 + $0xf0] sm:$0xf]
    %v90 = vld [vmem:[%s1 + $0xf4] sm:$0xf]
    %v91 = vld [vmem:[%s1 + $0xf8] sm:$0xf]
    %v92 = vld [vmem:[%s1 + $0xfc] sm:$0xf]
    %v93 = vld [vmem:[%s1 + $0x100] sm:$0xf]
    %v94 = vld [vmem:[%s1 + $0x104] sm:$0xf]
    %v95 = vld [vmem:[%s1 + $0x108] sm:$0xf]
    %v96 = vld [vmem:[%s1 + $0x10c] sm:$0xf]
    %v97 = vld [vmem:[%s1 + $0x110] sm:$0xf]
    %v98 = vld [vmem:[%s1 + $0x114] sm:$0xf]
    %v99 = vld [vmem:[%s1 + $0x118] sm:$0xf]
    %v100 = vld [vmem:[%s1 + $0x11c] sm:$0xf]
    %v101 = vld [vmem:[%s1 + $0x120] sm:$0xf]
    %v102 = vld [vmem:[%s1 + $0x124] sm:$0xf]
    %v103 = vld [vmem:[%s1 + $0x128] sm:$0xf]
    %v104 = vld [vmem:[%s1 + $0x12c] sm:$0xf]
    %v105 = vld [vmem:[%s1 + $0x130] sm:$0xf]
    %v106 = vld [vmem:[%s1 + $0x134] sm:$0xf]
    %v107 = vld [vmem:[%s1 + $0x138] sm:$0xf]
    %v108 = vld [vmem:[%s1 + $0x13c] sm:$0xf]
    %v109 = vld [vmem:[%s1 + $0x140] sm:$0xf]
    %v110 = vld [vmem:[%s1 + $0x144] sm:$0xf]
    %v111 = vld [vmem:[%s1 + $0x148] sm:$0xf]
    %v112 = vld [vmem:[%s1 + $0x14c] sm:$0xf]
    %v113 = vld [vmem:[%s1 + $0x150] sm:$0xf]
    %v114 = vld [vmem:[%s1 + $0x154] sm:$0xf]
    %v115 = vld [vmem:[%s1 + $0x158] sm:$0xf]
    %v116 = vld [vmem:[%s1 + $0x15c] sm:$0xf]
    %v117 = vld [vmem:[%s1 + $0x160] sm:$0xf]
    %v118 = vld [vmem:[%s1 + $0x164] sm:$0xf]
    %v119 = vld [vmem:[%s1 + $0x168] sm:$0xf]
    %v120 = vld [vmem:[%s1 + $0x16c] sm:$0xf]
    %v121 = vld [vmem:[%s1 + $0x170] sm:$0xf]
    %v122 = vld [vmem:[%s1 + $0x174] sm:$0xf]
    %v123 = vld [vmem:[%s1 + $0x178] sm:$0xf]
    %v124 = vld [vmem:[%s1 + $0x17c] sm:$0xf]
    %v125 = vld [vmem:[%s1 + $0x180] sm:$0xf]
    %v126 = vld [vmem:[%s1 + $0x184] sm:$0xf]
    %v127 = vld [vmem:[%s1 + $0x188] sm:$0xf]
    %v128 = vld [vmem:[%s1 + $0x18c] sm:$0xf]
    %v129 = vld [vmem:[%s1 + $0x190] sm:$0xf]
    %v130 = vld [vmem:[%s1 + $0x194] sm:$0xf]
    %v131 = vld [vmem:[%s1 + $0x198] sm:$0xf]
    %v132 = vld [vmem:[%s1 + $0x19c] sm:$0xf]
    %v133 = vld [vmem:[%s1 + $0x1a0] sm:$0xf]
    %v134 = vld [vmem:[%s1 + $0x1a4] sm:$0xf]
    %v135 = vld [vmem:[%s1 + $0x1a8] sm:$0xf]
    %v136 = vld [vmem:[%s1 + $0x1ac] sm:$0xf]
    %v137 = vld [vmem:[%s1 + $0x1b0] sm:$0xf]
    %v138 = vld [vmem:[%s1 + $0x1b4] sm:$0xf]
    %v139 = vld [vmem:[%s1 + $0x1b8] sm:$0xf]
    %v140 = vld [vmem:[%s1 + $0x1bc] sm:$0xf]
    %v141 = vld [vmem:[%s1 + $0x1c0] sm:$0xf]
    %v142 = vld [vmem:[%s1 + $0x1c4] sm:$0xf]
    %v143 = vld [vmem:[%s1 + $0x1c8] sm:$0xf]
    %v144 = vld [vmem:[%s1 + $0x1cc] sm:$0xf]
    %v145 = vld [vmem:[%s1 + $0x1d0] sm:$0xf]
    %v146 = vld [vmem:[%s1 + $0x1d4] sm:$0xf]
    %v147 = vld [vmem:[%s1 + $0x1d8] sm:$0xf]
    %v148 = vld [vmem:[%s1 + $0x1dc] sm:$0xf]
    %v149 = vld [vmem:[%s1 + $0x1e0] sm:$0xf]
    %v150 = vld [vmem:[%s1 + $0x1e4] sm:$0xf]
    %v151 = vld [vmem:[%s1 + $0x1e8] sm:$0xf]
    %v152 = vld [vmem:[%s1 + $0x1ec] sm:$0xf]
    %v153 = vld [vmem:[%s1 + $0x1f0] sm:$0xf]
    %v154 = vld [vmem:[%s1 + $0x1f4] sm:$0xf]
    %v155 = vld [vmem:[%s1 + $0x1f8] sm:$0xf]
    %v156 = vld [vmem:[%s1 + $0x1fc] sm:$0xf]
    %v157 = vld [vmem:[%s2] sm:$0x1]
    %v159 = vlaneseq
    %v160 = vshrl.u32 %v159, 7
    %v161 = vsub.s32 0, %v160
    %v162 = vrot.slane %v157, %v161
    %v168 = vunpack.c.l.b16 %v25
    %v169 = vunpack.c.h.b16 %v25
    %v170 = vunpack.c.l.b16 %v26
    %v171 = vunpack.c.h.b16 %v26
    %v172 = vunpack.c.l.b16 %v27
    %v173 = vunpack.c.h.b16 %v27
    %v174 = vunpack.c.l.b16 %v28
    %v175 = vunpack.c.h.b16 %v28
    %v176 = vpack.c.b16 %v168, %v168
    %v177 = vpack.c.b16 %v169, %v169
    %v178 = vpack.c.b16 %v170, %v170
    %v179 = vpack.c.b16 %v171, %v171
    %v180 = vpack.c.b16 %v172, %v172
    %v181 = vpack.c.b16 %v173, %v173
    %v182 = vpack.c.b16 %v174, %v174
    %v183 = vpack.c.b16 %v175, %v175
    %v320 = vunpack.c.l.b16 %v29
    %v321 = vunpack.c.l.b16 %v30
    %v322 = vunpack.c.l.b16 %v31
    %v323 = vunpack.c.l.b16 %v32
    %v324 = vunpack.c.l.b16 %v33
    %v325 = vunpack.c.l.b16 %v34
    %v326 = vunpack.c.l.b16 %v35
    %v327 = vunpack.c.l.b16 %v36
    %v328 = vunpack.c.l.b16 %v37
    %v329 = vunpack.c.l.b16 %v38
    %v330 = vunpack.c.l.b16 %v39
    %v331 = vunpack.c.l.b16 %v40
    %v332 = vunpack.c.l.b16 %v41
    %v333 = vunpack.c.l.b16 %v42
    %v334 = vunpack.c.l.b16 %v43
    %v335 = vunpack.c.l.b16 %v44
    %v336 = vunpack.c.l.b16 %v45
    %v337 = vunpack.c.l.b16 %v46
    %v338 = vunpack.c.l.b16 %v47
    %v339 = vunpack.c.l.b16 %v48
    %v340 = vunpack.c.l.b16 %v49
    %v341 = vunpack.c.l.b16 %v50
    %v342 = vunpack.c.l.b16 %v51
    %v343 = vunpack.c.l.b16 %v52
    %v344 = vunpack.c.l.b16 %v53
    %v345 = vunpack.c.l.b16 %v54
    %v346 = vunpack.c.l.b16 %v55
    %v347 = vunpack.c.l.b16 %v56
    %v348 = vunpack.c.l.b16 %v57
    %v349 = vunpack.c.l.b16 %v58
    %v350 = vunpack.c.l.b16 %v59
    %v351 = vunpack.c.l.b16 %v60
    %v352 = vunpack.c.l.b16 %v61
    %v353 = vunpack.c.l.b16 %v62
    %v354 = vunpack.c.l.b16 %v63
    %v355 = vunpack.c.l.b16 %v64
    %v356 = vunpack.c.l.b16 %v65
    %v357 = vunpack.c.l.b16 %v66
    %v358 = vunpack.c.l.b16 %v67
    %v359 = vunpack.c.l.b16 %v68
    %v360 = vunpack.c.l.b16 %v69
    %v361 = vunpack.c.l.b16 %v70
    %v362 = vunpack.c.l.b16 %v71
    %v363 = vunpack.c.l.b16 %v72
    %v364 = vunpack.c.l.b16 %v73
    %v365 = vunpack.c.l.b16 %v74
    %v366 = vunpack.c.l.b16 %v75
    %v367 = vunpack.c.l.b16 %v76
    %v368 = vunpack.c.l.b16 %v77
    %v369 = vunpack.c.l.b16 %v78
    %v370 = vunpack.c.l.b16 %v79
    %v371 = vunpack.c.l.b16 %v80
    %v372 = vunpack.c.l.b16 %v81
    %v373 = vunpack.c.l.b16 %v82
    %v374 = vunpack.c.l.b16 %v83
    %v375 = vunpack.c.l.b16 %v84
    %v376 = vunpack.c.l.b16 %v85
    %v377 = vunpack.c.l.b16 %v86
    %v378 = vunpack.c.l.b16 %v87
    %v379 = vunpack.c.l.b16 %v88
    %v380 = vunpack.c.l.b16 %v89
    %v381 = vunpack.c.l.b16 %v90
    %v382 = vunpack.c.l.b16 %v91
    %v383 = vunpack.c.l.b16 %v92
    %v384 = vunpack.c.l.b16 %v93
    %v385 = vunpack.c.l.b16 %v94
    %v386 = vunpack.c.l.b16 %v95
    %v387 = vunpack.c.l.b16 %v96
    %v388 = vunpack.c.l.b16 %v97
    %v389 = vunpack.c.l.b16 %v98
    %v390 = vunpack.c.l.b16 %v99
    %v391 = vunpack.c.l.b16 %v100
    %v392 = vunpack.c.l.b16 %v101
    %v393 = vunpack.c.l.b16 %v102
    %v394 = vunpack.c.l.b16 %v103
    %v395 = vunpack.c.l.b16 %v104
    %v396 = vunpack.c.l.b16 %v105
    %v397 = vunpack.c.l.b16 %v106
    %v398 = vunpack.c.l.b16 %v107
    %v399 = vunpack.c.l.b16 %v108
    %v400 = vunpack.c.l.b16 %v109
    %v401 = vunpack.c.l.b16 %v110
    %v402 = vunpack.c.l.b16 %v111
    %v403 = vunpack.c.l.b16 %v112
    %v404 = vunpack.c.l.b16 %v113
    %v405 = vunpack.c.l.b16 %v114
    %v406 = vunpack.c.l.b16 %v115
    %v407 = vunpack.c.l.b16 %v116
    %v408 = vunpack.c.l.b16 %v117
    %v409 = vunpack.c.l.b16 %v118
    %v410 = vunpack.c.l.b16 %v119
    %v411 = vunpack.c.l.b16 %v120
    %v412 = vunpack.c.l.b16 %v121
    %v413 = vunpack.c.l.b16 %v122
    %v414 = vunpack.c.l.b16 %v123
    %v415 = vunpack.c.l.b16 %v124
    %v416 = vunpack.c.l.b16 %v125
    %v417 = vunpack.c.l.b16 %v126
    %v418 = vunpack.c.l.b16 %v127
    %v419 = vunpack.c.l.b16 %v128
    %v420 = vunpack.c.l.b16 %v129
    %v421 = vunpack.c.l.b16 %v130
    %v422 = vunpack.c.l.b16 %v131
    %v423 = vunpack.c.l.b16 %v132
    %v424 = vunpack.c.l.b16 %v133
    %v425 = vunpack.c.l.b16 %v134
    %v426 = vunpack.c.l.b16 %v135
    %v427 = vunpack.c.l.b16 %v136
    %v428 = vunpack.c.l.b16 %v137
    %v429 = vunpack.c.l.b16 %v138
    %v430 = vunpack.c.l.b16 %v139
    %v431 = vunpack.c.l.b16 %v140
    %v432 = vunpack.c.l.b16 %v141
    %v433 = vunpack.c.l.b16 %v142
    %v434 = vunpack.c.l.b16 %v143
    %v435 = vunpack.c.l.b16 %v144
    %v436 = vunpack.c.l.b16 %v145
    %v437 = vunpack.c.l.b16 %v146
    %v438 = vunpack.c.l.b16 %v147
    %v439 = vunpack.c.l.b16 %v148
    %v440 = vunpack.c.l.b16 %v149
    %v441 = vunpack.c.l.b16 %v150
    %v442 = vunpack.c.l.b16 %v151
    %v443 = vunpack.c.l.b16 %v152
    %v444 = vunpack.c.l.b16 %v153
    %v445 = vunpack.c.l.b16 %v154
    %v446 = vunpack.c.l.b16 %v155
    %v447 = vunpack.c.l.b16 %v156
    %v448 = vpack.c.b16 %v321, %v320
    %v449 = vpack.c.b16 %v323, %v322
    %v450 = vpack.c.b16 %v325, %v324
    %v451 = vpack.c.b16 %v327, %v326
    %v452 = vpack.c.b16 %v329, %v328
    %v453 = vpack.c.b16 %v331, %v330
    %v454 = vpack.c.b16 %v333, %v332
    %v455 = vpack.c.b16 %v335, %v334
    %v456 = vpack.c.b16 %v337, %v336
    %v457 = vpack.c.b16 %v339, %v338
    %v458 = vpack.c.b16 %v341, %v340
    %v459 = vpack.c.b16 %v343, %v342
    %v460 = vpack.c.b16 %v345, %v344
    %v461 = vpack.c.b16 %v347, %v346
    %v462 = vpack.c.b16 %v349, %v348
    %v463 = vpack.c.b16 %v351, %v350
    %v464 = vpack.c.b16 %v353, %v352
    %v465 = vpack.c.b16 %v355, %v354
    %v466 = vpack.c.b16 %v357, %v356
    %v467 = vpack.c.b16 %v359, %v358
    %v468 = vpack.c.b16 %v361, %v360
    %v469 = vpack.c.b16 %v363, %v362
    %v470 = vpack.c.b16 %v365, %v364
    %v471 = vpack.c.b16 %v367, %v366
    %v472 = vpack.c.b16 %v369, %v368
    %v473 = vpack.c.b16 %v371, %v370
    %v474 = vpack.c.b16 %v373, %v372
    %v475 = vpack.c.b16 %v375, %v374
    %v476 = vpack.c.b16 %v377, %v376
    %v477 = vpack.c.b16 %v379, %v378
    %v478 = vpack.c.b16 %v381, %v380
    %v479 = vpack.c.b16 %v383, %v382
    %v480 = vpack.c.b16 %v385, %v384
    %v481 = vpack.c.b16 %v387, %v386
    %v482 = vpack.c.b16 %v389, %v388
    %v483 = vpack.c.b16 %v391, %v390
    %v484 = vpack.c.b16 %v393, %v392
    %v485 = vpack.c.b16 %v395, %v394
    %v486 = vpack.c.b16 %v397, %v396
    %v487 = vpack.c.b16 %v399, %v398
    %v488 = vpack.c.b16 %v401, %v400
    %v489 = vpack.c.b16 %v403, %v402
    %v490 = vpack.c.b16 %v405, %v404
    %v491 = vpack.c.b16 %v407, %v406
    %v492 = vpack.c.b16 %v409, %v408
    %v493 = vpack.c.b16 %v411, %v410
    %v494 = vpack.c.b16 %v413, %v412
    %v495 = vpack.c.b16 %v415, %v414
    %v496 = vpack.c.b16 %v417, %v416
    %v497 = vpack.c.b16 %v419, %v418
    %v498 = vpack.c.b16 %v421, %v420
    %v499 = vpack.c.b16 %v423, %v422
    %v500 = vpack.c.b16 %v425, %v424
    %v501 = vpack.c.b16 %v427, %v426
    %v502 = vpack.c.b16 %v429, %v428
    %v503 = vpack.c.b16 %v431, %v430
    %v504 = vpack.c.b16 %v433, %v432
    %v505 = vpack.c.b16 %v435, %v434
    %v506 = vpack.c.b16 %v437, %v436
    %v507 = vpack.c.b16 %v439, %v438
    %v508 = vpack.c.b16 %v441, %v440
    %v509 = vpack.c.b16 %v443, %v442
    %v510 = vpack.c.b16 %v445, %v444
    %v511 = vpack.c.b16 %v447, %v446
    %576 = vmatprep.subr.bf16.mxu0 0
    %577 = vmatpush1.bf16.msra.mxu0 %v455
    %578 = vmatprep.subr.bf16.mxu0 0
    %579 = vmatpush1.bf16.msra.mxu0 %v454
    %580 = vmatprep.subr.bf16.mxu0 0
    %581 = vmatpush1.bf16.msra.mxu0 %v453
    %582 = vmatprep.subr.bf16.mxu0 0
    %583 = vmatpush1.bf16.msra.mxu0 %v452
    %584 = vmatprep.subr.bf16.mxu0 0
    %585 = vmatpush1.bf16.msra.mxu0 %v451
    %586 = vmatprep.subr.bf16.mxu0 0
    %587 = vmatpush1.bf16.msra.mxu0 %v450
    %588 = vmatprep.subr.bf16.mxu0 0
    %589 = vmatpush1.bf16.msra.mxu0 %v449
    %590 = vmatprep.subr.bf16.mxu0 0
    %591 = vmatpush1.bf16.msra.mxu0 %v448
    %592 = vmatprep.subr.bf16.mxu0 0
    %593 = vmatpush2.bf16.msra.mxu0 %v463
    %594 = vmatprep.subr.bf16.mxu0 0
    %595 = vmatpush2.bf16.msra.mxu0 %v462
    %596 = vmatprep.subr.bf16.mxu0 0
    %597 = vmatpush2.bf16.msra.mxu0 %v461
    %598 = vmatprep.subr.bf16.mxu0 0
    %599 = vmatpush2.bf16.msra.mxu0 %v460
    %600 = vmatprep.subr.bf16.mxu0 0
    %601 = vmatpush2.bf16.msra.mxu0 %v459
    %602 = vmatprep.subr.bf16.mxu0 0
    %603 = vmatpush2.bf16.msra.mxu0 %v458
    %604 = vmatprep.subr.bf16.mxu0 0
    %605 = vmatpush2.bf16.msra.mxu0 %v457
    %606 = vmatprep.subr.bf16.mxu0 0
    %607 = vmatpush2.bf16.msra.mxu0 %v456
    %608 = vmatprep.mubr.bf16.mxu0 %v177
    %609 = vmatmul.mubr.bf16.gmra.mxu0 %v176
    %v610 = vpop.f32.mrf.mxu0
    %v611 = vadd.f32 %v162, %v610
    %v612 = vpop.f32.mrf.mxu0
    %v613 = vpop.f32.mrf.mxu0
    %v614 = vpop.f32.mrf.mxu0
    %615 = vdwg.mxu0
    %616 = vmatprep.subr.bf16.mxu0 0
    %617 = vmatpush1.bf16.msra.mxu0 %v471
    %618 = vmatprep.subr.bf16.mxu0 0
    %619 = vmatpush1.bf16.msra.mxu0 %v470
    %620 = vmatprep.subr.bf16.mxu0 0
    %621 = vmatpush1.bf16.msra.mxu0 %v469
    %622 = vmatprep.subr.bf16.mxu0 0
    %623 = vmatpush1.bf16.msra.mxu0 %v468
    %624 = vmatprep.subr.bf16.mxu0 0
    %625 = vmatpush1.bf16.msra.mxu0 %v467
    %626 = vmatprep.subr.bf16.mxu0 0
    %627 = vmatpush1.bf16.msra.mxu0 %v466
    %628 = vmatprep.subr.bf16.mxu0 0
    %629 = vmatpush1.bf16.msra.mxu0 %v465
    %630 = vmatprep.subr.bf16.mxu0 0
    %631 = vmatpush1.bf16.msra.mxu0 %v464
    %632 = vmatprep.subr.bf16.mxu0 0
    %633 = vmatpush2.bf16.msra.mxu0 %v479
    %634 = vmatprep.subr.bf16.mxu0 0
    %635 = vmatpush2.bf16.msra.mxu0 %v478
    %636 = vmatprep.subr.bf16.mxu0 0
    %637 = vmatpush2.bf16.msra.mxu0 %v477
    %638 = vmatprep.subr.bf16.mxu0 0
    %639 = vmatpush2.bf16.msra.mxu0 %v476
    %640 = vmatprep.subr.bf16.mxu0 0
    %641 = vmatpush2.bf16.msra.mxu0 %v475
    %642 = vmatprep.subr.bf16.mxu0 0
    %643 = vmatpush2.bf16.msra.mxu0 %v474
    %644 = vmatprep.subr.bf16.mxu0 0
    %645 = vmatpush2.bf16.msra.mxu0 %v473
    %646 = vmatprep.subr.bf16.mxu0 0
    %647 = vmatpush2.bf16.msra.mxu0 %v472
    %648 = vmatprep.mubr.bf16.mxu0 %v179
    %649 = vmatmul.mubr.bf16.gmra.mxu0 %v178
    %v650 = vpop.f32.mrf.mxu0
    %v651 = vadd.f32 %v611, %v650
    %v652 = vpop.f32.mrf.mxu0
    %v653 = vpop.f32.mrf.mxu0
    %v654 = vpop.f32.mrf.mxu0
    %655 = vdwg.mxu0
    %656 = vmatprep.subr.bf16.mxu0 0
    %657 = vmatpush1.bf16.msra.mxu0 %v487
    %658 = vmatprep.subr.bf16.mxu0 0
    %659 = vmatpush1.bf16.msra.mxu0 %v486
    %660 = vmatprep.subr.bf16.mxu0 0
    %661 = vmatpush1.bf16.msra.mxu0 %v485
    %662 = vmatprep.subr.bf16.mxu0 0
    %663 = vmatpush1.bf16.msra.mxu0 %v484
    %664 = vmatprep.subr.bf16.mxu0 0
    %665 = vmatpush1.bf16.msra.mxu0 %v483
    %666 = vmatprep.subr.bf16.mxu0 0
    %667 = vmatpush1.bf16.msra.mxu0 %v482
    %668 = vmatprep.subr.bf16.mxu0 0
    %669 = vmatpush1.bf16.msra.mxu0 %v481
    %670 = vmatprep.subr.bf16.mxu0 0
    %671 = vmatpush1.bf16.msra.mxu0 %v480
    %672 = vmatprep.subr.bf16.mxu0 0
    %673 = vmatpush2.bf16.msra.mxu0 %v495
    %674 = vmatprep.subr.bf16.mxu0 0
    %675 = vmatpush2.bf16.msra.mxu0 %v494
    %676 = vmatprep.subr.bf16.mxu0 0
    %677 = vmatpush2.bf16.msra.mxu0 %v493
    %678 = vmatprep.subr.bf16.mxu0 0
    %679 = vmatpush2.bf16.msra.mxu0 %v492
    %680 = vmatprep.subr.bf16.mxu0 0
    %681 = vmatpush2.bf16.msra.mxu0 %v491
    %682 = vmatprep.subr.bf16.mxu0 0
    %683 = vmatpush2.bf16.msra.mxu0 %v490
    %684 = vmatprep.subr.bf16.mxu0 0
    %685 = vmatpush2.bf16.msra.mxu0 %v489
    %686 = vmatprep.subr.bf16.mxu0 0
    %687 = vmatpush2.bf16.msra.mxu0 %v488
    %688 = vmatprep.mubr.bf16.mxu0 %v181
    %689 = vmatmul.mubr.bf16.gmra.mxu0 %v180
    %v690 = vpop.f32.mrf.mxu0
    %v691 = vadd.f32 %v651, %v690
    %v692 = vpop.f32.mrf.mxu0
    %v693 = vpop.f32.mrf.mxu0
    %v694 = vpop.f32.mrf.mxu0
    %695 = vdwg.mxu0
    %696 = vmatprep.subr.bf16.mxu0 0
    %697 = vmatpush1.bf16.msra.mxu0 %v503
    %698 = vmatprep.subr.bf16.mxu0 0
    %699 = vmatpush1.bf16.msra.mxu0 %v502
    %700 = vmatprep.subr.bf16.mxu0 0
    %701 = vmatpush1.bf16.msra.mxu0 %v501
    %702 = vmatprep.subr.bf16.mxu0 0
    %703 = vmatpush1.bf16.msra.mxu0 %v500
    %704 = vmatprep.subr.bf16.mxu0 0
    %705 = vmatpush1.bf16.msra.mxu0 %v499
    %706 = vmatprep.subr.bf16.mxu0 0
    %707 = vmatpush1.bf16.msra.mxu0 %v498
    %708 = vmatprep.subr.bf16.mxu0 0
    %709 = vmatpush1.bf16.msra.mxu0 %v497
    %710 = vmatprep.subr.bf16.mxu0 0
    %711 = vmatpush1.bf16.msra.mxu0 %v496
    %712 = vmatprep.subr.bf16.mxu0 0
    %713 = vmatpush2.bf16.msra.mxu0 %v511
    %714 = vmatprep.subr.bf16.mxu0 0
    %715 = vmatpush2.bf16.msra.mxu0 %v510
    %716 = vmatprep.subr.bf16.mxu0 0
    %717 = vmatpush2.bf16.msra.mxu0 %v509
    %718 = vmatprep.subr.bf16.mxu0 0
    %719 = vmatpush2.bf16.msra.mxu0 %v508
    %720 = vmatprep.subr.bf16.mxu0 0
    %721 = vmatpush2.bf16.msra.mxu0 %v507
    %722 = vmatprep.subr.bf16.mxu0 0
    %723 = vmatpush2.bf16.msra.mxu0 %v506
    %724 = vmatprep.subr.bf16.mxu0 0
    %725 = vmatpush2.bf16.msra.mxu0 %v505
    %726 = vmatprep.subr.bf16.mxu0 0
    %727 = vmatpush2.bf16.msra.mxu0 %v504
    %728 = vmatprep.mubr.bf16.mxu0 %v183
    %729 = vmatmul.mubr.bf16.gmra.mxu0 %v182
    %v730 = vpop.f32.mrf.mxu0
    %v731 = vadd.f32 %v691, %v730
    %v732 = vpop.f32.mrf.mxu0
    %v733 = vpop.f32.mrf.mxu0
    %v734 = vpop.f32.mrf.mxu0
    %735 = vdwg.mxu0
    %v736 = vmax.f32 %v731, 0.0
    %v737 = vpack.c.bf16 %v736, %v736
    %v738 = vld [vmem:[%s3] sm:$0xf]
    %v739 = vld [vmem:[%s3 + $0x4] sm:$0xf]
    %v740 = vld [vmem:[%s3 + $0x8] sm:$0xf]
    %v741 = vld [vmem:[%s3 + $0xc] sm:$0xf]
    %v742 = vld [vmem:[%s4] sm:$0x1]
    %v744 = vlaneseq
    %v745 = vshrl.u32 %v744, 7
    %v746 = vsub.s32 0, %v745
    %v747 = vrot.slane %v742, %v746
    %v753 = vunpack.c.l.b16 %v738
    %v754 = vunpack.c.l.b16 %v739
    %v755 = vunpack.c.l.b16 %v740
    %v756 = vunpack.c.l.b16 %v741
    %v757 = vpack.c.b16 %v754, %v753
    %v758 = vpack.c.b16 %v756, %v755
    %vm761 = vcmask 261120
    %v763 = vsel %vm761, %v737, 0
    %765 = vmatprep.subr.bf16.mxu0 0
    %766 = vmatpush1.bf16.msra.mxu0 0
    %767 = vmatprep.subr.bf16.mxu0 0
    %768 = vmatpush1.bf16.msra.mxu0 0
    %769 = vmatprep.subr.bf16.mxu0 0
    %770 = vmatpush1.bf16.msra.mxu0 0
    %771 = vmatprep.subr.bf16.mxu0 0
    %772 = vmatpush1.bf16.msra.mxu0 0
    %773 = vmatprep.subr.bf16.mxu0 0
    %774 = vmatpush1.bf16.msra.mxu0 0
    %775 = vmatprep.subr.bf16.mxu0 0
    %776 = vmatpush1.bf16.msra.mxu0 0
    %777 = vmatprep.subr.bf16.mxu0 0
    %778 = vmatpush1.bf16.msra.mxu0 %v758
    %779 = vmatprep.subr.bf16.mxu0 0
    %780 = vmatpush1.bf16.msra.mxu0 %v757
    %781 = vmatprep.subr.bf16.mxu0 0
    %782 = vmatpush2.bf16.msra.mxu0 0
    %783 = vmatprep.subr.bf16.mxu0 0
    %784 = vmatpush2.bf16.msra.mxu0 0
    %785 = vmatprep.subr.bf16.mxu0 0
    %786 = vmatpush2.bf16.msra.mxu0 0
    %787 = vmatprep.subr.bf16.mxu0 0
    %788 = vmatpush2.bf16.msra.mxu0 0
    %789 = vmatprep.subr.bf16.mxu0 0
    %790 = vmatpush2.bf16.msra.mxu0 0
    %791 = vmatprep.subr.bf16.mxu0 0
    %792 = vmatpush2.bf16.msra.mxu0 0
    %793 = vmatprep.subr.bf16.mxu0 0
    %794 = vmatpush2.bf16.msra.mxu0 0
    %795 = vmatprep.subr.bf16.mxu0 0
    %796 = vmatpush2.bf16.msra.mxu0 0
    %797 = vmatprep.mubr.bf16.mxu0 0
    %798 = vmatmul.mubr.bf16.gmra.mxu0 %v763
    %v799 = vpop.f32.mrf.mxu0
    %v800 = vadd.f32 %v747, %v799
    %v801 = vpop.f32.mrf.mxu0
    %v802 = vpop.f32.mrf.mxu0
    %v803 = vpop.f32.mrf.mxu0
    %804 = vdwg.mxu0
    %805 = vmax.xlane.f32.xlu0 %v800
    %v806 = vpop.xlane.xlu0 %805
    %v807 = vsub.f32 %v800, %v806
    %v808 = vmul.f32 %v807, 1.442695
    %v809 = vpow.pop %v808
    %810 = vadd.xlane.f32.xlu0 %v809
    %v811 = vpop.xlane.xlu0 %810
    %v812 = vrcp.pop %v811
    %v813 = vmul.f32 %v809, %v812
    %v814 = vld [vmem:[%s5] sm:$0xff]
    %vm815 = vcmask 64512
    %v817 = vsel %vm815, %v814, 0
    %819 = vmatprep.subr.mxu0 0.0
    %820 = vmatpush1.msra.mxu0 0.0
    %821 = vmatprep.subr.mxu0 0.0
    %822 = vmatpush1.msra.mxu0 0.0
    %823 = vmatprep.subr.mxu0 0.0
    %824 = vmatpush1.msra.mxu0 0.0
    %825 = vmatprep.subr.mxu0 0.0
    %826 = vmatpush1.msra.mxu0 0.0
    %827 = vmatprep.subr.mxu0 0.0
    %828 = vmatpush1.msra.mxu0 0.0
    %829 = vmatprep.subr.mxu0 0.0
    %830 = vmatpush1.msra.mxu0 0.0
    %831 = vmatprep.subr.mxu0 0.0
    %832 = vmatpush1.msra.mxu0 0.0
    %833 = vmatprep.subr.mxu0 0.0
    %834 = vmatpush1.msra.mxu0 0.0
    %835 = vmatprep.subr.mxu0 0.0
    %836 = vmatpush1.msra.mxu0 0.0
    %837 = vmatprep.subr.mxu0 0.0
    %838 = vmatpush1.msra.mxu0 0.0
    %839 = vmatprep.subr.mxu0 0.0
    %840 = vmatpush1.msra.mxu0 0.0
    %841 = vmatprep.subr.mxu0 0.0
    %842 = vmatpush1.msra.mxu0 0.0
    %843 = vmatprep.subr.mxu0 0.0
    %844 = vmatpush1.msra.mxu0 0.0
    %845 = vmatprep.subr.mxu0 0.0
    %846 = vmatpush1.msra.mxu0 0.0
    %847 = vmatprep.subr.mxu0 0.0
    %848 = vmatpush1.msra.mxu0 0.0
    %849 = vmatprep.subr.mxu0 0.0
    %850 = vmatpush1.msra.mxu0 %v813
    %851 = vmatprep.subr.mxu0 0.0
    %852 = vmatpush2.msra.mxu0 0.0
    %853 = vmatprep.subr.mxu0 0.0
    %854 = vmatpush2.msra.mxu0 0.0
    %855 = vmatprep.subr.mxu0 0.0
    %856 = vmatpush2.msra.mxu0 0.0
    %857 = vmatprep.subr.mxu0 0.0
    %858 = vmatpush2.msra.mxu0 0.0
    %859 = vmatprep.subr.mxu0 0.0
    %860 = vmatpush2.msra.mxu0 0.0
    %861 = vmatprep.subr.mxu0 0.0
    %862 = vmatpush2.msra.mxu0 0.0
    %863 = vmatprep.subr.mxu0 0.0
    %864 = vmatpush2.msra.mxu0 0.0
    %865 = vmatprep.subr.mxu0 0.0
    %866 = vmatpush2.msra.mxu0 0.0
    %867 = vmatprep.subr.mxu0 0.0
    %868 = vmatpush2.msra.mxu0 0.0
    %869 = vmatprep.subr.mxu0 0.0
    %870 = vmatpush2.msra.mxu0 0.0
    %871 = vmatprep.subr.mxu0 0.0
    %872 = vmatpush2.msra.mxu0 0.0
    %873 = vmatprep.subr.mxu0 0.0
    %874 = vmatpush2.msra.mxu0 0.0
    %875 = vmatprep.subr.mxu0 0.0
    %876 = vmatpush2.msra.mxu0 0.0
    %877 = vmatprep.subr.mxu0 0.0
    %878 = vmatpush2.msra.mxu0 0.0
    %879 = vmatprep.subr.mxu0 0.0
    %880 = vmatpush2.msra.mxu0 0.0
    %881 = vmatprep.subr.mxu0 0.0
    %882 = vmatpush2.msra.mxu0 0.0
    %883 = vmatprep.mubr.f32.mxu0 0.0
    %884 = vmatmul.mubr.f32.gmra.mxu0 %v817
    %v885 = vpop.f32.mrf.mxu0
    %v886 = vadd.f32 0.0, %v885
    %v887 = vpop.f32.mrf.mxu0
    %888 = vdwg.mxu0
    %889 = vst [vmem:[#allocation2] sm:$0xff] %v886
    // Predicated region
    $region26: #{tpu_custom_call.1} parent=1 // pred_check
      _
    $region27: #{tpu_custom_call.1} parent=1 // pred_check_branch
      %891 = sbr.rel (0) target = $region29
    $region28: #{tpu_custom_call.1} parent=1 // pred_region
      %s893 = ssub.s32 128, 128
      %894 = vsyncadd [#allocation3], %s893
      %s896 = sshll.u32 [#allocation2], 4
      %s897 = int_to_ptr.vmem [resolvable:$true] %s896
      %899 = dma.vmem_to_hbm [thread:$0]  %s897, 128, %s6, [#allocation3]
    $region29: #{tpu_custom_call.1} parent=1 // pred_fallthru
      _
    // Predicated region
    $region30: #{tpu_custom_call.1} parent=1 // pred_check
      _
    $region31: #{tpu_custom_call.1} parent=1 // pred_check_branch
      %901 = sbr.rel (0) target = $region33
    $region32: #{tpu_custom_call.1} parent=1 // pred_region
      %902 = dma.done [#allocation3], 128
    $region33: #{tpu_custom_call.1} parent=1 // pred_fallthru
      _
    %903 = vsyncpa [#allocation3], 1

</llo_original>
